<compile_context>
chip_gen: v6e
topology: v6e:2x2x1
jax: 0.10.0
libtpu: 0.0.40
codegen_flags: <defaults>
</compile_context>

<pallas_src>
import functools

import jax
import jax.numpy as jnp
from jax.experimental import pallas as pl
from jax.experimental.pallas import tpu as pltpu


# ----------------------------------------------------------------------------- kernel
def _root_kernel(cout, has_residual, x_ref, w_ref, bias_ref, out_ref):
    """out = relu( x @ (w*scale) + bias [+ x[:, :cout]] ) — single fused GEMM + epilogue."""
    acc = jnp.dot(x_ref[...], w_ref[...], preferred_element_type=jnp.float32)
    acc = acc + bias_ref[...]
    if has_residual:
        # children[0] is the first Cout columns of the concatenated tile already in VMEM.
        acc = acc + x_ref[:, :cout].astype(jnp.float32)
    out_ref[...] = jnp.maximum(acc, 0.0).astype(out_ref.dtype)


# ---------------------------------------------------------------------------- wrapper
def _round_up(x, m):
    return (x + m - 1) // m * m


def root_pallas(children_nhwc, w2d, scale, bias, *, residual, tile_m=1024,
                compute_dtype=jnp.bfloat16, out_dtype=jnp.float32):
    """Root forward (inference-mode BatchNorm folded into scale/bias).

    children_nhwc : list of (N, H, W, C_k) arrays (same N, H, W).
    w2d           : (sum_k C_k, Cout) 1x1-conv weight in concat-channel order.
    scale, bias   : (Cout,) folded BatchNorm affine.
    out_dtype     : pass jnp.bfloat16 if the consumer accepts bf16 (halves HBM writes).
    """
    n, h, w, _ = children_nhwc[0].shape
    m = n * h * w
    cout = w2d.shape[1]
    if residual:
        assert children_nhwc[0].shape[-1] == cout, (
            "residual requires children[0] to have Cout channels (as in DLA)")

    # Concatenate children along channels; fuses with the compute-dtype cast (one copy).
    x = jnp.concatenate(
        [c.reshape(m, c.shape[-1]) for c in children_nhwc], axis=-1
    ).astype(compute_dtype)
    k_total = x.shape[-1]

    # Fold BN scale into the weight columns in f32, then cast for the MXU.
    w_scaled = (w2d.astype(jnp.float32) * scale[None, :].astype(jnp.float32)
                ).astype(compute_dtype)
    bias_2d = bias.reshape(1, cout).astype(jnp.float32)

    # Tile selection: multiple of 256 (cleanly feeds v6e/v7x 256-wide MXU, 128-aligned
    # for v5e), clamped so small-M problems still give >= 2 grid steps (v7x megacore).
    tile_m = max(256, min(tile_m, _round_up(pl.cdiv(m, 2), 256)))
    assert tile_m % 16 == 0  # bf16 sublane packing (16 rows per packed vreg)

    kernel = functools.partial(_root_kernel, cout, residual)
    out = pl.pallas_call(
        kernel,
        out_shape=jax.ShapeDtypeStruct((m, cout), out_dtype),
        grid=(pl.cdiv(m, tile_m),),
        in_specs=[
            pl.BlockSpec((tile_m, k_total), lambda i: (i, 0)),   # activations (tiled)
            pl.BlockSpec((k_total, cout), lambda i: (0, 0)),     # weight (resident)
            pl.BlockSpec((1, cout), lambda i: (0, 0)),           # bias (resident)
        ],
        out_specs=pl.BlockSpec((tile_m, cout), lambda i: (i, 0)),
        compiler_params=pltpu.CompilerParams(
            dimension_semantics=("parallel",)),
    )(x, w_scaled, bias_2d)
    return out.reshape(n, h, w, cout)


# --------------------------------------------------------------------------- reference
def root_reference(children_nhwc, w2d, scale, bias, residual):
    x = jnp.concatenate(children_nhwc, axis=-1)
    n, h, w, cin = x.shape
    y = x.reshape(-1, cin) @ w2d
    y = y * scale + bias
    if residual:
        y = y + children_nhwc[0].reshape(-1, w2d.shape[1])
    y = jnp.maximum(y, 0.0)
    return y.reshape(n, h, w, -1)


# -------------------------------------------------------------------------------- main
if __name__ == "__main__":
    key = jax.random.PRNGKey(0)
    k = jax.random.split(key, 8)

    # Root(in_channels=20, out_channels=8, kernel_size=1, residual=True), fed with the
    # children a DLA Tree would pass: x2 (N,8,H,W), x1 (N,8,H,W), bottom (N,4,H,W).
    N, H, W = 2, 16, 16
    child_channels = [8, 8, 4]
    Cout = 8
    residual = True

    cin_total = sum(child_channels)
    children_nchw = [
        jax.random.normal(k[i], (N, c, H, W), jnp.float32)
        for i, c in enumerate(child_channels)
    ]

    # conv weight (Cout, Cin_total, 1, 1) -> (Cin_total, Cout)
    w_oihw = 0.1 * jax.random.normal(k[4], (Cout, cin_total, 1, 1), jnp.float32)
    w2d = jnp.transpose(w_oihw[:, :, 0, 0], (1, 0))

    # inference-mode BatchNorm folded into per-channel scale/bias
    gamma = 1.0 + 0.1 * jax.random.normal(k[5], (Cout,), jnp.float32)
    beta = 0.1 * jax.random.normal(k[6], (Cout,), jnp.float32)
    mean = 0.1 * jax.random.normal(k[7], (Cout,), jnp.float32)
    var = jnp.abs(1.0 + 0.1 * jax.random.normal(k[3], (Cout,), jnp.float32))
    scale = gamma / jnp.sqrt(var + 1e-5)
    bias = beta - mean * scale

    children_nhwc = [jnp.transpose(c, (0, 2, 3, 1)) for c in children_nchw]
    out_nhwc = root_pallas(children_nhwc, w2d, scale, bias, residual=residual)
    out_nchw = jnp.transpose(out_nhwc, (0, 3, 1, 2))
    jax.block_until_ready(out_nchw)

    ref_nchw = jnp.transpose(
        root_reference(children_nhwc, w2d, scale, bias, residual), (0, 3, 1, 2))

    assert out_nchw.shape == (N, Cout, H, W), out_nchw.shape
    assert bool(jnp.all(jnp.isfinite(out_nchw)))
    max_err = float(jnp.max(jnp.abs(out_nchw - ref_nchw)))
    assert max_err < 5e-2, f"max abs err {max_err}"
    print("KERNEL_OK")
</pallas_src>

<mosaic_0001>
module attributes {stable_mosaic.version = 11 : i64} {
  func.func @_root_kernel(%arg0: i32, %arg1: memref<256x20xbf16, #tpu.memory_space<vmem>>, %arg2: memref<20x8xbf16, #tpu.memory_space<vmem>>, %arg3: memref<1x8xf32, #tpu.memory_space<vmem>>, %arg4: memref<256x8xf32, #tpu.memory_space<vmem>>) attributes {dimension_semantics = [#tpu.dimension_semantics<parallel>], iteration_bounds = array<i64: 2>, scalar_prefetch = 0 : i64, scratch_operands = 0 : i64, tpu.core_type = #tpu.core_type<tc>, window_params = [{transform_indices = @transform_0, window_bounds = array<i64: 256, 20>}, {pipeline_mode = #tpu.pipeline_mode<synchronous>, transform_indices = @transform_1, window_bounds = array<i64: 20, 8>}, {pipeline_mode = #tpu.pipeline_mode<synchronous>, transform_indices = @transform_2, window_bounds = array<i64: 1, 8>}, {transform_indices = @transform_3, window_bounds = array<i64: 256, 8>}]} {
    %c0 = arith.constant 0 : index
    %c0_0 = arith.constant 0 : index
    %0 = vector.load %arg1[%c0, %c0_0] : memref<256x20xbf16, #tpu.memory_space<vmem>>, vector<256x20xbf16>
    %c0_1 = arith.constant 0 : index
    %c0_2 = arith.constant 0 : index
    %1 = vector.load %arg2[%c0_1, %c0_2] : memref<20x8xbf16, #tpu.memory_space<vmem>>, vector<20x8xbf16>
    %cst = arith.constant dense<0.000000e+00> : vector<256x8xf32>
    %2 = tpu.matmul %0, %1, %cst {dimension_numbers = #tpu.dot_dimension_numbers<[1], [0], [0], [1], [0, 0, 1, 1], [], []>} : vector<256x20xbf16>, vector<20x8xbf16>, vector<256x8xf32> -> vector<256x8xf32>
    %c0_3 = arith.constant 0 : index
    %c0_4 = arith.constant 0 : index
    %3 = vector.load %arg3[%c0_3, %c0_4] : memref<1x8xf32, #tpu.memory_space<vmem>>, vector<1x8xf32>
    %4 = vector.broadcast %3 : vector<1x8xf32> to vector<256x8xf32>
    %5 = arith.addf %2, %4 : vector<256x8xf32>
    %c0_5 = arith.constant 0 : index
    %c0_6 = arith.constant 0 : index
    %6 = vector.load %arg1[%c0_5, %c0_6] : memref<256x20xbf16, #tpu.memory_space<vmem>>, vector<256x8xbf16>
    %7 = arith.extf %6 : vector<256x8xbf16> to vector<256x8xf32>
    %8 = arith.addf %5, %7 : vector<256x8xf32>
    %cst_7 = arith.constant 0.000000e+00 : f32
    %9 = vector.broadcast %cst_7 : f32 to vector<256x8xf32>
    %10 = arith.maximumf %8, %9 : vector<256x8xf32>
    %c0_8 = arith.constant 0 : index
    %c0_9 = arith.constant 0 : index
    %11 = vector.load %arg4[%c0_8, %c0_9] : memref<256x8xf32, #tpu.memory_space<vmem>>, vector<256x8xf32>
    tpu.vector_store %arg4[%c0_8, %c0_9], %10 {strides = array<i32>} : memref<256x8xf32, #tpu.memory_space<vmem>>, vector<256x8xf32>,
    return
  }
  func.func @transform_0(%arg0: i32) -> (i32, i32) {
    %c0_i32 = arith.constant 0 : i32
    %c0_i32_0 = arith.constant 0 : i32
    return %arg0, %c0_i32 : i32, i32
  }
  func.func @transform_1(%arg0: i32) -> (i32, i32) {
    %c0_i32 = arith.constant 0 : i32
    %c0_i32_0 = arith.constant 0 : i32
    %c0_i32_1 = arith.constant 0 : i32
    return %c0_i32, %c0_i32_0 : i32, i32
  }
  func.func @transform_2(%arg0: i32) -> (i32, i32) {
    %c0_i32 = arith.constant 0 : i32
    %c0_i32_0 = arith.constant 0 : i32
    %c0_i32_1 = arith.constant 0 : i32
    return %c0_i32, %c0_i32_0 : i32, i32
  }
  func.func @transform_3(%arg0: i32) -> (i32, i32) {
    %c0_i32 = arith.constant 0 : i32
    %c0_i32_0 = arith.constant 0 : i32
    return %arg0, %c0_i32 : i32, i32
  }
}

</mosaic_0001>

<llo_original>
// kernel: tpu_custom_call.1
$region0: #{tpu_custom_call.1}
  #allocation0 [shape = 'u32[]', space=smem, size = 0x4, offset = 0x4, fixed_abs, tag = 'smem constant byte address 0x4 - core index']
  #allocation1 [shape = 'u32[144,128]{1,0:T(1,128)}', space=vmem, size = 0x12000, scoped, tag = 'internal scratch']
  %s0 = inlined_call_operand.vmem [shape: bf16[512,20], index: 0, kind: input, shape index: {}]
  %s1 = inlined_call_operand.vmem [shape: bf16[20,8], index: 1, kind: input, shape index: {}]
  %s2 = inlined_call_operand.vmem [shape: f32[1,8], index: 2, kind: input, shape index: {}]
  %s3 = inlined_call_operand.vmem [shape: f32[512,8], index: 3, kind: output, shape index: {}]
  %s4 = sld [smem:[#allocation0]]
  $region45: #{tpu_custom_call.1} parent=0
    _
  %s6 = ssub.s32 1, %s4
  %s7 = scalar_select 0, %s6, %s4
  loop: start=0, step=1, limit=4
  $region2: #{tpu_custom_call.1} parent=0 // loop_pre_header
    _
  $region3: #{tpu_custom_call.1} parent=0 // loop_header
    %s9 = sphi 0, %s13
    %p10 = scmp.ge.s32.totalorder %s9, 4
    %s19 = sphi 0, %s21
    %s22 = sphi 0, %s19
    %s23 = sphi 0, %s22
    %s39 = sphi 0, %s23
    %s43 = sphi 0, %s43
    %s45 = sphi 0, %s43
    %s46 = sphi 0, %s45
    %s60 = sphi 0, %s46
    %s64 = sphi 0, %s64
    %s66 = sphi 0, %s64
    %s67 = sphi 0, %s66
    %s81 = sphi 0, %s67
    %s87 = sphi 0, %s89
    %s90 = sphi 0, %s87
    %s91 = sphi 0, %s90
    %s107 = sphi 0, %s91
  $region4: #{tpu_custom_call.1} parent=0 // loop_header_branch
    %12 = sbr.rel (%p10) target = $region8
  $region5: #{tpu_custom_call.1} parent=0 // loop_body
    %s14 = ssub.s32 %s9, 1
    %s15 = ssub.s32 %s9, 2
    %s16 = sadd.s32 %s9, 1
    %s17 = ssub.s32 %s9, %s16
    %p18 = scmp.eq.s32.totalorder %s17, 0
    %s20 = sadd.s32 %s19, 1
    %s21 = scalar_select %p18, %s19, %s20
    %p24 = pneg %p18
    %p25 = scmp.eq.s32.totalorder %s9, 1
    %p26 = por %p24, %p25
    %p27 = scmp.ne.s32.totalorder %s19, %s22
    %p28 = scmp.eq.s32.totalorder %s9, 0
    %p29 = por %p27, %p28
    %p30 = scmp.ne.s32.totalorder %s19, %s22
    %p31 = scmp.eq.s32.totalorder %s14, 1
    %p32 = por %p30, %p31
    %p33 = scmp.ne.s32.totalorder %s22, %s23
    %p34 = scmp.eq.s32.totalorder %s14, 0
    %p35 = por %p33, %p34
    %p36 = scmp.ne.s32.totalorder %s22, %s23
    %p37 = scmp.eq.s32.totalorder %s15, 1
    %p38 = por %p36, %p37
    %p40 = scmp.ne.s32.totalorder %s23, %s39
    %p41 = scmp.eq.s32.totalorder %s15, 0
    %p42 = por %p40, %p41
    %s44 = sadd.s32 %s43, 1
    %p47 = scmp.eq.s32.totalorder %s9, 1
    %p48 = scmp.ne.s32.totalorder %s43, %s45
    %p49 = scmp.eq.s32.totalorder %s9, 0
    %p50 = por %p48, %p49
    %p51 = scmp.ne.s32.totalorder %s43, %s45
    %p52 = scmp.eq.s32.totalorder %s14, 1
    %p53 = por %p51, %p52
    %p54 = scmp.ne.s32.totalorder %s45, %s46
    %p55 = scmp.eq.s32.totalorder %s14, 0
    %p56 = por %p54, %p55
    %p57 = scmp.ne.s32.totalorder %s45, %s46
    %p58 = scmp.eq.s32.totalorder %s15, 1
    %p59 = por %p57, %p58
    %p61 = scmp.ne.s32.totalorder %s46, %s60
    %p62 = scmp.eq.s32.totalorder %s15, 0
    %p63 = por %p61, %p62
    %s65 = sadd.s32 %s64, 1
    %p68 = scmp.eq.s32.totalorder %s9, 1
    %p69 = scmp.ne.s32.totalorder %s64, %s66
    %p70 = scmp.eq.s32.totalorder %s9, 0
    %p71 = por %p69, %p70
    %p72 = scmp.ne.s32.totalorder %s64, %s66
    %p73 = scmp.eq.s32.totalorder %s14, 1
    %p74 = por %p72, %p73
    %p75 = scmp.ne.s32.totalorder %s66, %s67
    %p76 = scmp.eq.s32.totalorder %s14, 0
    %p77 = por %p75, %p76
    %p78 = scmp.ne.s32.totalorder %s66, %s67
    %p79 = scmp.eq.s32.totalorder %s15, 1
    %p80 = por %p78, %p79
    %p82 = scmp.ne.s32.totalorder %s67, %s81
    %p83 = scmp.eq.s32.totalorder %s15, 0
    %p84 = por %p82, %p83
    %s85 = ssub.s32 %s9, %s16
    %p86 = scmp.eq.s32.totalorder %s85, 0
    %s88 = sadd.s32 %s87, 1
    %s89 = scalar_select %p86, %s87, %s88
    %p92 = pneg %p86
    %p93 = scmp.eq.s32.totalorder %s9, 1
    %p94 = por %p92, %p93
    %p95 = scmp.ne.s32.totalorder %s87, %s90
    %p96 = scmp.eq.s32.totalorder %s9, 0
    %p97 = por %p95, %p96
    %p98 = scmp.ne.s32.totalorder %s87, %s90
    %p99 = scmp.eq.s32.totalorder %s14, 1
    %p100 = por %p98, %p99
    %p101 = scmp.ne.s32.totalorder %s90, %s91
    %p102 = scmp.eq.s32.totalorder %s14, 0
    %p103 = por %p101, %p102
    %p104 = scmp.ne.s32.totalorder %s90, %s91
    %p105 = scmp.eq.s32.totalorder %s15, 1
    %p106 = por %p104, %p105
    %p108 = scmp.ne.s32.totalorder %s91, %s107
    %p109 = scmp.eq.s32.totalorder %s15, 0
    %p110 = por %p108, %p109
    %p111 = scmp.le.s32.totalorder 1, %s9
    %p112 = scmp.lt.s32.totalorder %s9, 3
    %p113 = pnand %p111, %p112
    %p114 = pneg %p113
    // Predicated region
    $region9: #{tpu_custom_call.1} parent=5 // pred_check
      _
    $region10: #{tpu_custom_call.1} parent=5 // pred_check_branch
      %116 = sbr.rel (%p113) target = $region12
    $region11: #{tpu_custom_call.1} parent=5 // pred_region
      %s117 = ssub.s32 %s9, 1
      // Predicated region
      $region13: #{tpu_custom_call.1} parent=11 // pred_check
        %p118 = pneg %p56
      $region14: #{tpu_custom_call.1} parent=11 // pred_check_branch
        %120 = sbr.rel (%p118) target = $region16
      $region15: #{tpu_custom_call.1} parent=11 // pred_region
        _
      $region16: #{tpu_custom_call.1} parent=11 // pred_fallthru
        _
      // Predicated region
      $region17: #{tpu_custom_call.1} parent=11 // pred_check
        %p121 = pneg %p77
      $region18: #{tpu_custom_call.1} parent=11 // pred_check_branch
        %123 = sbr.rel (%p121) target = $region20
      $region19: #{tpu_custom_call.1} parent=11 // pred_region
        _
      $region20: #{tpu_custom_call.1} parent=11 // pred_fallthru
        _
    $region12: #{tpu_custom_call.1} parent=5 // pred_fallthru
      _
    %p124 = scmp.lt.s32.totalorder %s9, 2
    // Predicated region
    $region21: #{tpu_custom_call.1} parent=5 // pred_check
      %p125 = pneg %p124
    $region22: #{tpu_custom_call.1} parent=5 // pred_check_branch
      %127 = sbr.rel (%p125) target = $region24
    $region23: #{tpu_custom_call.1} parent=5 // pred_region
      // Predicated region
      $region25: #{tpu_custom_call.1} parent=23 // pred_check
        %p128 = pneg %p29
      $region26: #{tpu_custom_call.1} parent=23 // pred_check_branch
        %130 = sbr.rel (%p128) target = $region28
      $region27: #{tpu_custom_call.1} parent=23 // pred_region
        %s131 = smul.u32 32, %s9
        %p132 = scmp.lt.s32.totalorder %s131, 63
        %s133 = scalar_select %p132, %s131, 63
        %s134 = smul.addr %s133, 4
        %s135 = scalar_lea.vmem %s0, %s134
        %s136 = smul.u32 32, %s9
      $region28: #{tpu_custom_call.1} parent=23 // pred_fallthru
        _
    $region24: #{tpu_custom_call.1} parent=5 // pred_fallthru
      _
    %p137 = scmp.le.s32.totalorder 1, %s9
    %p138 = scmp.lt.s32.totalorder %s9, 3
    %p139 = pnand %p137, %p138
    %p140 = pneg %p139
    // Predicated region
    $region29: #{tpu_custom_call.1} parent=5 // pred_check
      _
    $region30: #{tpu_custom_call.1} parent=5 // pred_check_branch
      %142 = sbr.rel (%p139) target = $region32
    $region31: #{tpu_custom_call.1} parent=5 // pred_region
      %s143 = ssub.s32 %s9, 1
      %s144 = smul.u32 32, %s14
      %p145 = scmp.lt.s32.totalorder %s144, 63
      %s146 = scalar_select %p145, %s144, 63
      %s147 = smul.addr %s146, 4
      %s148 = scalar_lea.vmem %s0, %s147
      %p149 = pneg %p35
      %p150 = pneg %p32
      %p151 = pneg %p56
      %p152 = pneg %p53
      %p153 = pneg %p77
      %p154 = pneg %p74
      %p155 = pneg %p103
      %p156 = pneg %p100
      %s157 = smul.u32 32, %s14
      %p158 = scmp.lt.s32.totalorder %s157, 63
      %s159 = scalar_select %p158, %s157, 63
      %s160 = smul.addr %s159, 8
      %s161 = scalar_lea.vmem %s3, %s160
      %s162 = smul.u32 32, %s14
      %p163 = scmp.lt.s32.totalorder %s162, 63
      %s164 = scalar_select %p163, %s162, 63
      %s165 = smul.addr %s164, 4
      %s166 = scalar_lea.vmem %s0, %s165
      %s167 = smul.u32 32, %s14
      %s168 = smul.u32 32, %s14
      %p169 = scmp.lt.s32.totalorder %s168, 63
      %s170 = scalar_select %p169, %s168, 63
      %s171 = smul.addr %s170, 8
      %s172 = scalar_lea.vmem %s3, %s171
      %s173 = smul.u32 32, %s14
      %v175 = vld [vmem:[%s166] sm:$0xf]
      %v176 = vld [vmem:[%s166 + $0x4] sm:$0xf]
      %v177 = vld [vmem:[%s166 + $0x8] sm:$0xf]
      %v178 = vld [vmem:[%s166 + $0xc] sm:$0xf]
      %v179 = vld [vmem:[%s166 + $0x10] sm:$0xf]
      %v180 = vld [vmem:[%s166 + $0x14] sm:$0xf]
      %v181 = vld [vmem:[%s166 + $0x18] sm:$0xf]
      %v182 = vld [vmem:[%s166 + $0x1c] sm:$0xf]
      %v183 = vld [vmem:[%s166 + $0x20] sm:$0xf]
      %v184 = vld [vmem:[%s166 + $0x24] sm:$0xf]
      %v185 = vld [vmem:[%s166 + $0x28] sm:$0xf]
      %v186 = vld [vmem:[%s166 + $0x2c] sm:$0xf]
      %v187 = vld [vmem:[%s166 + $0x30] sm:$0xf]
      %v188 = vld [vmem:[%s166 + $0x34] sm:$0xf]
      %v189 = vld [vmem:[%s166 + $0x38] sm:$0xf]
      %v190 = vld [vmem:[%s166 + $0x3c] sm:$0xf]
      %v191 = vld [vmem:[%s166 + $0x40] sm:$0xf]
      %v192 = vld [vmem:[%s166 + $0x44] sm:$0xf]
      %v193 = vld [vmem:[%s166 + $0x48] sm:$0xf]
      %v194 = vld [vmem:[%s166 + $0x4c] sm:$0xf]
      %v195 = vld [vmem:[%s166 + $0x50] sm:$0xf]
      %v196 = vld [vmem:[%s166 + $0x54] sm:$0xf]
      %v197 = vld [vmem:[%s166 + $0x58] sm:$0xf]
      %v198 = vld [vmem:[%s166 + $0x5c] sm:$0xf]
      %v199 = vld [vmem:[%s166 + $0x60] sm:$0xf]
      %v200 = vld [vmem:[%s166 + $0x64] sm:$0xf]
      %v201 = vld [vmem:[%s166 + $0x68] sm:$0xf]
      %v202 = vld [vmem:[%s166 + $0x6c] sm:$0xf]
      %v203 = vld [vmem:[%s166 + $0x70] sm:$0xf]
      %v204 = vld [vmem:[%s166 + $0x74] sm:$0xf]
      %v205 = vld [vmem:[%s166 + $0x78] sm:$0xf]
      %v206 = vld [vmem:[%s166 + $0x7c] sm:$0xf]
      %v207 = vld [vmem:[%s1] sm:$0xf]
      %v208 = vld [vmem:[%s1 + $0x4] sm:$0xf]
      %v209 = vld [vmem:[%s1 + $0x8] sm:$0x3]
      %v210 = vld [vmem:[%s2] sm:$0x1]
      %v212 = vlaneseq
      %v213 = vshrl.u32 %v212, 7
      %v214 = vsub.s32 0, %v213
      %v215 = vrot.slane %v210, %v214
      %v249 = vunpack.c.l.b16 %v175
      %v250 = vunpack.c.l.b16 %v176
      %v251 = vunpack.c.l.b16 %v177
      %v252 = vunpack.c.l.b16 %v178
      %v253 = vunpack.c.l.b16 %v179
      %v254 = vunpack.c.l.b16 %v180
      %v255 = vunpack.c.l.b16 %v181
      %v256 = vunpack.c.l.b16 %v182
      %v257 = vunpack.c.l.b16 %v183
      %v258 = vunpack.c.l.b16 %v184
      %v259 = vunpack.c.l.b16 %v185
      %v260 = vunpack.c.l.b16 %v186
      %v261 = vunpack.c.l.b16 %v187
      %v262 = vunpack.c.l.b16 %v188
      %v263 = vunpack.c.l.b16 %v189
      %v264 = vunpack.c.l.b16 %v190
      %v265 = vunpack.c.l.b16 %v191
      %v266 = vunpack.c.l.b16 %v192
      %v267 = vunpack.c.l.b16 %v193
      %v268 = vunpack.c.l.b16 %v194
      %v269 = vunpack.c.l.b16 %v195
      %v270 = vunpack.c.l.b16 %v196
      %v271 = vunpack.c.l.b16 %v197
      %v272 = vunpack.c.l.b16 %v198
      %v273 = vunpack.c.l.b16 %v199
      %v274 = vunpack.c.l.b16 %v200
      %v275 = vunpack.c.l.b16 %v201
      %v276 = vunpack.c.l.b16 %v202
      %v277 = vunpack.c.l.b16 %v203
      %v278 = vunpack.c.l.b16 %v204
      %v279 = vunpack.c.l.b16 %v205
      %v280 = vunpack.c.l.b16 %v206
      %v281 = vpack.c.b16 %v250, %v249
      %v282 = vpack.c.b16 %v252, %v251
      %v283 = vpack.c.b16 %v254, %v253
      %v284 = vpack.c.b16 %v256, %v255
      %v285 = vpack.c.b16 %v258, %v257
      %v286 = vpack.c.b16 %v260, %v259
      %v287 = vpack.c.b16 %v262, %v261
      %v288 = vpack.c.b16 %v264, %v263
      %v289 = vpack.c.b16 %v266, %v265
      %v290 = vpack.c.b16 %v268, %v267
      %v291 = vpack.c.b16 %v270, %v269
      %v292 = vpack.c.b16 %v272, %v271
      %v293 = vpack.c.b16 %v274, %v273
      %v294 = vpack.c.b16 %v276, %v275
      %v295 = vpack.c.b16 %v278, %v277
      %v296 = vpack.c.b16 %v280, %v279
      %v300 = vunpack.c.l.b16 %v207
      %v301 = vunpack.c.l.b16 %v208
      %v302 = vunpack.c.l.b16 %v209
      %v303 = vpack.c.b16 %v301, %v300
      %v304 = vpack.c.b16 %v302, %v302
      %vm306 = vcmask 162816
      %v308 = vsel %vm306, %v281, 0
      %v311 = vsel %vm306, %v282, 0
      %v314 = vsel %vm306, %v283, 0
      %v317 = vsel %vm306, %v284, 0
      %v320 = vsel %vm306, %v285, 0
      %v323 = vsel %vm306, %v286, 0
      %v326 = vsel %vm306, %v287, 0
      %v329 = vsel %vm306, %v288, 0
      %v332 = vsel %vm306, %v289, 0
      %v335 = vsel %vm306, %v290, 0
      %v338 = vsel %vm306, %v291, 0
      %v341 = vsel %vm306, %v292, 0
      %v344 = vsel %vm306, %v293, 0
      %v347 = vsel %vm306, %v294, 0
      %v350 = vsel %vm306, %v295, 0
      %v353 = vsel %vm306, %v296, 0
      %vm355 = vcmask 1041408
      %v357 = vsel %vm355, %v304, 0
      %359 = vmatprep.subr.bf16.mxu0 0
      %360 = vmatpush1.bf16.msra.mxu0 0
      %361 = vmatprep.subr.bf16.mxu0 0
      %362 = vmatpush1.bf16.msra.mxu0 0
      %363 = vmatprep.subr.bf16.mxu0 0
      %364 = vmatpush1.bf16.msra.mxu0 0
      %365 = vmatprep.subr.bf16.mxu0 0
      %366 = vmatpush1.bf16.msra.mxu0 0
      %367 = vmatprep.subr.bf16.mxu0 0
      %368 = vmatpush1.bf16.msra.mxu0 0
      %369 = vmatprep.subr.bf16.mxu0 0
      %370 = vmatpush1.bf16.msra.mxu0 0
      %371 = vmatprep.subr.bf16.mxu0 0
      %372 = vmatpush1.bf16.msra.mxu0 %v357
      %373 = vmatprep.subr.bf16.mxu0 0
      %374 = vmatpush1.bf16.msra.mxu0 %v303
      %375 = vmatprep.subr.bf16.mxu0 0
      %376 = vmatpush2.bf16.msra.mxu0 0
      %377 = vmatprep.subr.bf16.mxu0 0
      %378 = vmatpush2.bf16.msra.mxu0 0
      %379 = vmatprep.subr.bf16.mxu0 0
      %380 = vmatpush2.bf16.msra.mxu0 0
      %381 = vmatprep.subr.bf16.mxu0 0
      %382 = vmatpush2.bf16.msra.mxu0 0
      %383 = vmatprep.subr.bf16.mxu0 0
      %384 = vmatpush2.bf16.msra.mxu0 0
      %385 = vmatprep.subr.bf16.mxu0 0
      %386 = vmatpush2.bf16.msra.mxu0 0
      %387 = vmatprep.subr.bf16.mxu0 0
      %388 = vmatpush2.bf16.msra.mxu0 0
      %389 = vmatprep.subr.bf16.mxu0 0
      %390 = vmatpush2.bf16.msra.mxu0 0
      %391 = vmatprep.mubr.bf16.mxu0 0
      %392 = vmatmul.mubr.bf16.gmra.mxu0 %v308
      %v393 = vpop.f32.mrf.mxu0
      %v394 = vadd.f32 %v215, %v393
      %v395 = vpop.f32.mrf.mxu0
      %v396 = vpop.f32.mrf.mxu0
      %v397 = vadd.f32 %v215, %v396
      %v398 = vpop.f32.mrf.mxu0
      %399 = vmatprep.mubr.bf16.mxu0 0
      %400 = vmatmul.mubr.bf16.gmra.mxu0 %v311
      %v401 = vpop.f32.mrf.mxu0
      %v402 = vadd.f32 %v215, %v401
      %v403 = vpop.f32.mrf.mxu0
      %v404 = vpop.f32.mrf.mxu0
      %v405 = vadd.f32 %v215, %v404
      %v406 = vpop.f32.mrf.mxu0
      %407 = vmatprep.mubr.bf16.mxu0 0
      %408 = vmatmul.mubr.bf16.gmra.mxu0 %v314
      %v409 = vpop.f32.mrf.mxu0
      %v410 = vadd.f32 %v215, %v409
      %v411 = vpop.f32.mrf.mxu0
      %v412 = vpop.f32.mrf.mxu0
      %v413 = vadd.f32 %v215, %v412
      %v414 = vpop.f32.mrf.mxu0
      %415 = vmatprep.mubr.bf16.mxu0 0
      %416 = vmatmul.mubr.bf16.gmra.mxu0 %v317
      %v417 = vpop.f32.mrf.mxu0
      %v418 = vadd.f32 %v215, %v417
      %v419 = vpop.f32.mrf.mxu0
      %v420 = vpop.f32.mrf.mxu0
      %v421 = vadd.f32 %v215, %v420
      %v422 = vpop.f32.mrf.mxu0
      %423 = vmatprep.mubr.bf16.mxu0 0
      %424 = vmatmul.mubr.bf16.gmra.mxu0 %v320
      %v425 = vpop.f32.mrf.mxu0
      %v426 = vadd.f32 %v215, %v425
      %v427 = vpop.f32.mrf.mxu0
      %v428 = vpop.f32.mrf.mxu0
      %v429 = vadd.f32 %v215, %v428
      %v430 = vpop.f32.mrf.mxu0
      %431 = vmatprep.mubr.bf16.mxu0 0
      %432 = vmatmul.mubr.bf16.gmra.mxu0 %v323
      %v433 = vpop.f32.mrf.mxu0
      %v434 = vadd.f32 %v215, %v433
      %v435 = vpop.f32.mrf.mxu0
      %v436 = vpop.f32.mrf.mxu0
      %v437 = vadd.f32 %v215, %v436
      %v438 = vpop.f32.mrf.mxu0
      %439 = vmatprep.mubr.bf16.mxu0 0
      %440 = vmatmul.mubr.bf16.gmra.mxu0 %v326
      %v441 = vpop.f32.mrf.mxu0
      %v442 = vadd.f32 %v215, %v441
      %v443 = vpop.f32.mrf.mxu0
      %v444 = vpop.f32.mrf.mxu0
      %v445 = vadd.f32 %v215, %v444
      %v446 = vpop.f32.mrf.mxu0
      %447 = vmatprep.mubr.bf16.mxu0 0
      %448 = vmatmul.mubr.bf16.gmra.mxu0 %v329
      %v449 = vpop.f32.mrf.mxu0
      %v450 = vadd.f32 %v215, %v449
      %v451 = vpop.f32.mrf.mxu0
      %v452 = vpop.f32.mrf.mxu0
      %v453 = vadd.f32 %v215, %v452
      %v454 = vpop.f32.mrf.mxu0
      %455 = vmatprep.mubr.bf16.mxu0 0
      %456 = vmatmul.mubr.bf16.gmra.mxu0 %v332
      %v457 = vpop.f32.mrf.mxu0
      %v458 = vadd.f32 %v215, %v457
      %v459 = vpop.f32.mrf.mxu0
      %v460 = vpop.f32.mrf.mxu0
      %v461 = vadd.f32 %v215, %v460
      %v462 = vpop.f32.mrf.mxu0
      %463 = vmatprep.mubr.bf16.mxu0 0
      %464 = vmatmul.mubr.bf16.gmra.mxu0 %v335
      %v465 = vpop.f32.mrf.mxu0
      %v466 = vadd.f32 %v215, %v465
      %v467 = vpop.f32.mrf.mxu0
      %v468 = vpop.f32.mrf.mxu0
      %v469 = vadd.f32 %v215, %v468
      %v470 = vpop.f32.mrf.mxu0
      %471 = vmatprep.mubr.bf16.mxu0 0
      %472 = vmatmul.mubr.bf16.gmra.mxu0 %v338
      %v473 = vpop.f32.mrf.mxu0
      %v474 = vadd.f32 %v215, %v473
      %v475 = vpop.f32.mrf.mxu0
      %v476 = vpop.f32.mrf.mxu0
      %v477 = vadd.f32 %v215, %v476
      %v478 = vpop.f32.mrf.mxu0
      %479 = vmatprep.mubr.bf16.mxu0 0
      %480 = vmatmul.mubr.bf16.gmra.mxu0 %v341
      %v481 = vpop.f32.mrf.mxu0
      %v482 = vadd.f32 %v215, %v481
      %v483 = vpop.f32.mrf.mxu0
      %v484 = vpop.f32.mrf.mxu0
      %v485 = vadd.f32 %v215, %v484
      %v486 = vpop.f32.mrf.mxu0
      %487 = vmatprep.mubr.bf16.mxu0 0
      %488 = vmatmul.mubr.bf16.gmra.mxu0 %v344
      %v489 = vpop.f32.mrf.mxu0
      %v490 = vadd.f32 %v215, %v489
      %v491 = vpop.f32.mrf.mxu0
      %v492 = vpop.f32.mrf.mxu0
      %v493 = vadd.f32 %v215, %v492
      %v494 = vpop.f32.mrf.mxu0
      %495 = vmatprep.mubr.bf16.mxu0 0
      %496 = vmatmul.mubr.bf16.gmra.mxu0 %v347
      %v497 = vpop.f32.mrf.mxu0
      %v498 = vadd.f32 %v215, %v497
      %v499 = vpop.f32.mrf.mxu0
      %v500 = vpop.f32.mrf.mxu0
      %v501 = vadd.f32 %v215, %v500
      %v502 = vpop.f32.mrf.mxu0
      %503 = vmatprep.mubr.bf16.mxu0 0
      %504 = vmatmul.mubr.bf16.gmra.mxu0 %v350
      %v505 = vpop.f32.mrf.mxu0
      %v506 = vadd.f32 %v215, %v505
      %v507 = vpop.f32.mrf.mxu0
      %v508 = vpop.f32.mrf.mxu0
      %v509 = vadd.f32 %v215, %v508
      %v510 = vpop.f32.mrf.mxu0
      %511 = vmatprep.mubr.bf16.mxu0 0
      %512 = vmatmul.mubr.bf16.gmra.mxu0 %v353
      %v513 = vpop.f32.mrf.mxu0
      %v514 = vadd.f32 %v215, %v513
      %v515 = vpop.f32.mrf.mxu0
      %v516 = vpop.f32.mrf.mxu0
      %v517 = vadd.f32 %v215, %v516
      %v518 = vpop.f32.mrf.mxu0
      %519 = vdwg.mxu0
      %v520 = vunpack.c.l.bf16 %v175
      %v521 = vunpack.c.l.bf16 %v176
      %v522 = vunpack.c.l.bf16 %v177
      %v523 = vunpack.c.l.bf16 %v178
      %v524 = vunpack.c.l.bf16 %v179
      %v525 = vunpack.c.l.bf16 %v180
      %v526 = vunpack.c.l.bf16 %v181
      %v527 = vunpack.c.l.bf16 %v182
      %v528 = vunpack.c.l.bf16 %v183
      %v529 = vunpack.c.l.bf16 %v184
      %v530 = vunpack.c.l.bf16 %v185
      %v531 = vunpack.c.l.bf16 %v186
      %v532 = vunpack.c.l.bf16 %v187
      %v533 = vunpack.c.l.bf16 %v188
      %v534 = vunpack.c.l.bf16 %v189
      %v535 = vunpack.c.l.bf16 %v190
      %v536 = vunpack.c.l.bf16 %v191
      %v537 = vunpack.c.l.bf16 %v192
      %v538 = vunpack.c.l.bf16 %v193
      %v539 = vunpack.c.l.bf16 %v194
      %v540 = vunpack.c.l.bf16 %v195
      %v541 = vunpack.c.l.bf16 %v196
      %v542 = vunpack.c.l.bf16 %v197
      %v543 = vunpack.c.l.bf16 %v198
      %v544 = vunpack.c.l.bf16 %v199
      %v545 = vunpack.c.l.bf16 %v200
      %v546 = vunpack.c.l.bf16 %v201
      %v547 = vunpack.c.l.bf16 %v202
      %v548 = vunpack.c.l.bf16 %v203
      %v549 = vunpack.c.l.bf16 %v204
      %v550 = vunpack.c.l.bf16 %v205
      %v551 = vunpack.c.l.bf16 %v206
      %v552 = vadd.f32 %v394, %v520
      %v553 = vadd.f32 %v397, %v521
      %v554 = vadd.f32 %v402, %v522
      %v555 = vadd.f32 %v405, %v523
      %v556 = vadd.f32 %v410, %v524
      %v557 = vadd.f32 %v413, %v525
      %v558 = vadd.f32 %v418, %v526
      %v559 = vadd.f32 %v421, %v527
      %v560 = vadd.f32 %v426, %v528
      %v561 = vadd.f32 %v429, %v529
      %v562 = vadd.f32 %v434, %v530
      %v563 = vadd.f32 %v437, %v531
      %v564 = vadd.f32 %v442, %v532
      %v565 = vadd.f32 %v445, %v533
      %v566 = vadd.f32 %v450, %v534
      %v567 = vadd.f32 %v453, %v535
      %v568 = vadd.f32 %v458, %v536
      %v569 = vadd.f32 %v461, %v537
      %v570 = vadd.f32 %v466, %v538
      %v571 = vadd.f32 %v469, %v539
      %v572 = vadd.f32 %v474, %v540
      %v573 = vadd.f32 %v477, %v541
      %v574 = vadd.f32 %v482, %v542
      %v575 = vadd.f32 %v485, %v543
      %v576 = vadd.f32 %v490, %v544
      %v577 = vadd.f32 %v493, %v545
      %v578 = vadd.f32 %v498, %v546
      %v579 = vadd.f32 %v501, %v547
      %v580 = vadd.f32 %v506, %v548
      %v581 = vadd.f32 %v509, %v549
      %v582 = vadd.f32 %v514, %v550
      %v583 = vadd.f32 %v517, %v551
      %v584 = vmax.f32 %v552, 0.0
      %v585 = vmax.f32 %v553, 0.0
      %v586 = vmax.f32 %v554, 0.0
      %v587 = vmax.f32 %v555, 0.0
      %v588 = vmax.f32 %v556, 0.0
      %v589 = vmax.f32 %v557, 0.0
      %v590 = vmax.f32 %v558, 0.0
      %v591 = vmax.f32 %v559, 0.0
      %v592 = vmax.f32 %v560, 0.0
      %v593 = vmax.f32 %v561, 0.0
      %v594 = vmax.f32 %v562, 0.0
      %v595 = vmax.f32 %v563, 0.0
      %v596 = vmax.f32 %v564, 0.0
      %v597 = vmax.f32 %v565, 0.0
      %v598 = vmax.f32 %v566, 0.0
      %v599 = vmax.f32 %v567, 0.0
      %v600 = vmax.f32 %v568, 0.0
      %v601 = vmax.f32 %v569, 0.0
      %v602 = vmax.f32 %v570, 0.0
      %v603 = vmax.f32 %v571, 0.0
      %v604 = vmax.f32 %v572, 0.0
      %v605 = vmax.f32 %v573, 0.0
      %v606 = vmax.f32 %v574, 0.0
      %v607 = vmax.f32 %v575, 0.0
      %v608 = vmax.f32 %v576, 0.0
      %v609 = vmax.f32 %v577, 0.0
      %v610 = vmax.f32 %v578, 0.0
      %v611 = vmax.f32 %v579, 0.0
      %v612 = vmax.f32 %v580, 0.0
      %v613 = vmax.f32 %v581, 0.0
      %v614 = vmax.f32 %v582, 0.0
      %v615 = vmax.f32 %v583, 0.0
      %vm616 = vcmask 64512
      %617 = vst.msk [vmem:[%s172] sm:$0xff] %vm616, %v584
      %618 = vst.msk [vmem:[%s172 + $0x8] sm:$0xff] %vm616, %v585
      %619 = vst.msk [vmem:[%s172 + $0x10] sm:$0xff] %vm616, %v586
      %620 = vst.msk [vmem:[%s172 + $0x18] sm:$0xff] %vm616, %v587
      %621 = vst.msk [vmem:[%s172 + $0x20] sm:$0xff] %vm616, %v588
      %622 = vst.msk [vmem:[%s172 + $0x28] sm:$0xff] %vm616, %v589
      %623 = vst.msk [vmem:[%s172 + $0x30] sm:$0xff] %vm616, %v590
      %624 = vst.msk [vmem:[%s172 + $0x38] sm:$0xff] %vm616, %v591
      %625 = vst.msk [vmem:[%s172 + $0x40] sm:$0xff] %vm616, %v592
      %626 = vst.msk [vmem:[%s172 + $0x48] sm:$0xff] %vm616, %v593
      %627 = vst.msk [vmem:[%s172 + $0x50] sm:$0xff] %vm616, %v594
      %628 = vst.msk [vmem:[%s172 + $0x58] sm:$0xff] %vm616, %v595
      %629 = vst.msk [vmem:[%s172 + $0x60] sm:$0xff] %vm616, %v596
      %630 = vst.msk [vmem:[%s172 + $0x68] sm:$0xff] %vm616, %v597
      %631 = vst.msk [vmem:[%s172 + $0x70] sm:$0xff] %vm616, %v598
      %632 = vst.msk [vmem:[%s172 + $0x78] sm:$0xff] %vm616, %v599
      %633 = vst.msk [vmem:[%s172 + $0x80] sm:$0xff] %vm616, %v600
      %634 = vst.msk [vmem:[%s172 + $0x88] sm:$0xff] %vm616, %v601
      %635 = vst.msk [vmem:[%s172 + $0x90] sm:$0xff] %vm616, %v602
      %636 = vst.msk [vmem:[%s172 + $0x98] sm:$0xff] %vm616, %v603
      %637 = vst.msk [vmem:[%s172 + $0xa0] sm:$0xff] %vm616, %v604
      %638 = vst.msk [vmem:[%s172 + $0xa8] sm:$0xff] %vm616, %v605
      %639 = vst.msk [vmem:[%s172 + $0xb0] sm:$0xff] %vm616, %v606
      %640 = vst.msk [vmem:[%s172 + $0xb8] sm:$0xff] %vm616, %v607
      %641 = vst.msk [vmem:[%s172 + $0xc0] sm:$0xff] %vm616, %v608
      %642 = vst.msk [vmem:[%s172 + $0xc8] sm:$0xff] %vm616, %v609
      %643 = vst.msk [vmem:[%s172 + $0xd0] sm:$0xff] %vm616, %v610
      %644 = vst.msk [vmem:[%s172 + $0xd8] sm:$0xff] %vm616, %v611
      %645 = vst.msk [vmem:[%s172 + $0xe0] sm:$0xff] %vm616, %v612
      %646 = vst.msk [vmem:[%s172 + $0xe8] sm:$0xff] %vm616, %v613
      %647 = vst.msk [vmem:[%s172 + $0xf0] sm:$0xff] %vm616, %v614
      %648 = vst.msk [vmem:[%s172 + $0xf8] sm:$0xff] %vm616, %v615
      %s649 = smul.u32 32, %s14
      %p650 = scmp.lt.s32.totalorder %s649, 63
      %s651 = scalar_select %p650, %s649, 63
      %s652 = smul.addr %s651, 8
      %s653 = scalar_lea.vmem %s3, %s652
      // Predicated region
      $region33: #{tpu_custom_call.1} parent=31 // pred_check
        %p654 = pneg %p100
      $region34: #{tpu_custom_call.1} parent=31 // pred_check_branch
        %656 = sbr.rel (%p654) target = $region36
      $region35: #{tpu_custom_call.1} parent=31 // pred_region
        %s657 = smul.u32 32, %s14
      $region36: #{tpu_custom_call.1} parent=31 // pred_fallthru
        _
    $region32: #{tpu_custom_call.1} parent=5 // pred_fallthru
      _
    %p658 = scmp.le.s32.totalorder 2, %s9
    // Predicated region
    $region37: #{tpu_custom_call.1} parent=5 // pred_check
      %p659 = pneg %p658
    $region38: #{tpu_custom_call.1} parent=5 // pred_check_branch
      %661 = sbr.rel (%p659) target = $region40
    $region39: #{tpu_custom_call.1} parent=5 // pred_region
      %s662 = ssub.s32 %s9, 2
      // Predicated region
      $region41: #{tpu_custom_call.1} parent=39 // pred_check
        %p663 = pneg %p106
      $region42: #{tpu_custom_call.1} parent=39 // pred_check_branch
        %665 = sbr.rel (%p663) target = $region44
      $region43: #{tpu_custom_call.1} parent=39 // pred_region
        %s666 = smul.u32 32, %s15
        %p667 = scmp.lt.s32.totalorder %s666, 63
        %s668 = scalar_select %p667, %s666, 63
        %s669 = smul.addr %s668, 8
        %s670 = scalar_lea.vmem %s3, %s669
      $region44: #{tpu_custom_call.1} parent=39 // pred_fallthru
        _
    $region40: #{tpu_custom_call.1} parent=5 // pred_fallthru
      _
  $region6: #{tpu_custom_call.1} parent=0 // loop_footer
    %s13 = sadd.s32 1, %s9
  $region7: #{tpu_custom_call.1} parent=0 // loop_footer_branch
    %8 = sbr.rel target = $region3
  $region8: #{tpu_custom_call.1} parent=0 // loop_exit
    _

</llo_original>
